<compile_context>
chip_gen: v5e
topology: v5e:2x2
jax: 0.10.0
libtpu: 0.0.40
codegen_flags: <defaults>
</compile_context>

<pallas_src>
import functools

import jax
import jax.numpy as jnp
from jax import lax
from jax.experimental import pallas as pl
from jax.experimental.pallas import tpu as pltpu


def _round_up(a: int, m: int) -> int:
    return (a + m - 1) // m * m


def _cdiv(a: int, b: int) -> int:
    return -(-a // b)


def _critic_kernel(x_ref, p_ref, b2_ref, o_ref, *, n_chunks, chunk, k_dim, h_dim):
    # x_ref : (K, slab)      batch along lanes, slab = n_chunks * chunk
    # p_ref : (H, K + 2)     packed [w1 | b1 | w2] in PyTorch (out, in) layout
    # b2_ref: (1, 1)         SMEM scalar
    # o_ref : (1, slab)      lane-dense output row
    p = p_ref[...]
    w1 = p[:, :k_dim]                     # (H, K)
    b1 = p[:, k_dim:k_dim + 1]            # (H, 1)
    w2 = p[:, k_dim + 1:k_dim + 2]        # (H, 1)
    b2 = b2_ref[0, 0]

    # Hoisted out of the chunk loop (JAX does not CSE broadcast_in_dim).
    b1_b = jnp.broadcast_to(b1, (h_dim, chunk))

    def chunk_body(c, carry):
        col = c * chunk
        if not isinstance(col, int):
            col = pl.multiple_of(col, 128)

        if k_dim <= 32:
            # Tiny contraction depth: K broadcast multiply-adds on the VPU
            # beat a <2%-utilized f32 MXU matmul (and skip MRF pop latency).
            xc = x_ref[:, pl.ds(col, chunk)]            # (K, chunk)
            h = b1_b
            for k in range(k_dim):
                h = h + w1[:, k:k + 1] * xc[k:k + 1, :]  # (H,1)*(1,chunk)
        else:
            xc = x_ref[:, pl.ds(col, chunk)]
            h = jnp.dot(w1, xc, preferred_element_type=jnp.float32) + b1_b

        h = jnp.maximum(h, 0.0)                          # ReLU, (H, chunk)

        # fc2 (single output unit): VPU multiply + sublane (XLU) reduce.
        v = jnp.sum(h * w2, axis=0, keepdims=True) + b2  # (1, chunk)
        o_ref[0:1, pl.ds(col, chunk)] = v.astype(o_ref.dtype)
        return carry

    if n_chunks == 1:
        chunk_body(0, 0)
    else:
        lax.fori_loop(0, n_chunks, chunk_body, 0, unroll=True)


def critic_forward_t(x_t, w1, b1, w2, b2, *, chunk_max=1024, max_chunks_per_step=4):
    """Fused Critic forward on feature-major input.

    x_t: (input_size, B) float32 (batch on the fast axis; no transpose needed)
    w1 : (hidden, input_size), b1: (hidden,)   -- PyTorch fc1 layout
    w2 : (1, hidden),          b2: (1,)        -- PyTorch fc2 layout
    returns (B, 1) float32
    """
    assert chunk_max % 128 == 0
    in_size, B = x_t.shape
    H = w1.shape[0]

    # Lane-aligned chunk (<= 1024 lanes so h stays within half the vreg file),
    # several chunks per grid step to amortize the ~0.35us per-step overhead,
    # and a grid of >= 2 steps whenever there are >= 2 chunks (v7x megacore).
    chunk = min(chunk_max, _round_up(B, 128))
    total = _cdiv(B, chunk)
    cps = max(1, min(max_chunks_per_step, total // 2)) if total >= 2 else 1
    slab = cps * chunk
    g = _cdiv(total, cps)
    b_pad = g * slab

    x_t = x_t.astype(jnp.float32)
    if b_pad != B:
        x_t = jnp.pad(x_t, ((0, 0), (0, b_pad - B)))

    # Pack fc1/fc2 parameters into a single replicated (H, K+2) block.
    params = jnp.concatenate(
        [w1.astype(jnp.float32),
         b1.reshape(H, 1).astype(jnp.float32),
         w2.reshape(H, 1).astype(jnp.float32)],
        axis=1)
    b2c = b2.reshape(1, 1).astype(jnp.float32)

    kernel = functools.partial(
        _critic_kernel, n_chunks=cps, chunk=chunk, k_dim=in_size, h_dim=H)

    out = pl.pallas_call(
        kernel,
        out_shape=jax.ShapeDtypeStruct((1, b_pad), jnp.float32),
        grid=(g,),
        in_specs=[
            pl.BlockSpec((in_size, slab), lambda i: (0, i)),       # x slab
            pl.BlockSpec((H, in_size + 2), lambda i: (0, 0)),      # packed params
            pl.BlockSpec((1, 1), lambda i: (0, 0),
                         memory_space=pltpu.MemorySpace.SMEM),     # b2 scalar
        ],
        out_specs=pl.BlockSpec((1, slab), lambda i: (0, i)),
        compiler_params=pltpu.CompilerParams(
            dimension_semantics=("parallel",)),
    )(x_t, params, b2c)

    return out[0, :B].reshape(B, 1)


def critic_forward(x, w1, b1, w2, b2, **kw):
    """PyTorch-layout entry point: x is (B, input_size), returns (B, 1).

    If the producer can store observations feature-major, call
    critic_forward_t directly and skip this transpose (extra HBM round trip).
    """
    return critic_forward_t(x.T, w1, b1, w2, b2, **kw)


def init_params(key, input_size, hidden_size):
    """PyTorch nn.Linear default init (uniform +-1/sqrt(fan_in)), PyTorch layout."""
    k1, k2, k3, k4 = jax.random.split(key, 4)
    bound1 = 1.0 / jnp.sqrt(float(input_size))
    bound2 = 1.0 / jnp.sqrt(float(hidden_size))
    w1 = jax.random.uniform(k1, (hidden_size, input_size), jnp.float32, -bound1, bound1)
    b1 = jax.random.uniform(k2, (hidden_size,), jnp.float32, -bound1, bound1)
    w2 = jax.random.uniform(k3, (1, hidden_size), jnp.float32, -bound2, bound2)
    b2 = jax.random.uniform(k4, (1,), jnp.float32, -bound2, bound2)
    return w1, b1, w2, b2


def _ref(x, w1, b1, w2, b2):
    return jnp.maximum(x @ w1.T + b1, 0.0) @ w2.T + b2


if __name__ == "__main__":
    # CartPole: observation dim = 4; small hidden size for the demo.
    input_size, hidden_size = 4, 32

    key = jax.random.PRNGKey(0)
    kx, kp = jax.random.split(key)
    w1, b1, w2, b2 = init_params(kp, input_size, hidden_size)

    # 1) Tiny batch (single grid step, single in-kernel chunk).
    x = jax.random.normal(kx, (8, input_size), jnp.float32)
    value = jax.block_until_ready(critic_forward(x, w1, b1, w2, b2))
    assert value.shape == (8, 1)
    assert jnp.allclose(value, _ref(x, w1, b1, w2, b2), atol=1e-5, rtol=1e-5)

    # 2) Rollout-sized batch with a small chunk to exercise the parallel grid
    #    (g > 1) and the padding / lane-dense output path.
    x2 = jax.random.normal(jax.random.PRNGKey(1), (300, input_size), jnp.float32)
    value2 = jax.block_until_ready(
        critic_forward(x2, w1, b1, w2, b2, chunk_max=128))
    assert value2.shape == (300, 1)
    assert jnp.allclose(value2, _ref(x2, w1, b1, w2, b2), atol=1e-5, rtol=1e-5)

    # 3) Larger batch on the feature-major (no-transpose) entry point,
    #    exercising the in-kernel chunk loop (chunks_per_step > 1) and g >= 2.
    x3_t = jax.random.normal(jax.random.PRNGKey(2), (input_size, 5000), jnp.float32)
    value3 = jax.block_until_ready(critic_forward_t(x3_t, w1, b1, w2, b2))
    assert value3.shape == (5000, 1)
    assert jnp.allclose(value3, _ref(x3_t.T, w1, b1, w2, b2), atol=1e-5, rtol=1e-5)

    print("KERNEL_OK")
</pallas_src>

<mosaic_0001>
module attributes {stable_mosaic.version = 11 : i64} {
  func.func @_critic_kernel(%arg0: i32, %arg1: memref<4x128xf32, #tpu.memory_space<vmem>>, %arg2: memref<32x6xf32, #tpu.memory_space<vmem>>, %arg3: memref<1x1xf32, #tpu.memory_space<smem>>, %arg4: memref<1x128xf32, #tpu.memory_space<vmem>>) attributes {dimension_semantics = [#tpu.dimension_semantics<parallel>], iteration_bounds = array<i64: 1>, scalar_prefetch = 0 : i64, scratch_operands = 0 : i64, tpu.core_type = #tpu.core_type<tc>, window_params = [{transform_indices = @transform_0, window_bounds = array<i64: 4, 128>}, {pipeline_mode = #tpu.pipeline_mode<synchronous>, transform_indices = @transform_1, window_bounds = array<i64: 32, 6>}, {transform_indices = @transform_2, window_bounds = array<i64: 1, 1>}, {transform_indices = @transform_3, window_bounds = array<i64: 1, 128>}]} {
    %c0 = arith.constant 0 : index
    %c0_0 = arith.constant 0 : index
    %0 = vector.load %arg2[%c0, %c0_0] : memref<32x6xf32, #tpu.memory_space<vmem>>, vector<32x6xf32>
    %1 = vector.extract_strided_slice %0 {offsets = [0, 0], sizes = [32, 4], strides = [1, 1]} : vector<32x6xf32> to vector<32x4xf32>
    %2 = vector.extract_strided_slice %0 {offsets = [0, 4], sizes = [32, 1], strides = [1, 1]} : vector<32x6xf32> to vector<32x1xf32>
    %3 = vector.extract_strided_slice %0 {offsets = [0, 5], sizes = [32, 1], strides = [1, 1]} : vector<32x6xf32> to vector<32x1xf32>
    %c0_1 = arith.constant 0 : index
    %c0_2 = arith.constant 0 : index
    %4 = memref.load %arg3[%c0_1, %c0_2] : memref<1x1xf32, #tpu.memory_space<smem>>
    %5 = vector.shape_cast %2 : vector<32x1xf32> to vector<32x1xf32>
    %6 = vector.broadcast %5 : vector<32x1xf32> to vector<32x128xf32>
    %c0_3 = arith.constant 0 : index
    %c0_4 = arith.constant 0 : index
    %7 = vector.load %arg1[%c0_3, %c0_4] : memref<4x128xf32, #tpu.memory_space<vmem>>, vector<4x128xf32>
    %8 = vector.extract_strided_slice %1 {offsets = [0, 0], sizes = [32, 1], strides = [1, 1]} : vector<32x4xf32> to vector<32x1xf32>
    %9 = vector.extract_strided_slice %7 {offsets = [0, 0], sizes = [1, 128], strides = [1, 1]} : vector<4x128xf32> to vector<1x128xf32>
    %10 = vector.broadcast %8 : vector<32x1xf32> to vector<32x128xf32>
    %11 = vector.broadcast %9 : vector<1x128xf32> to vector<32x128xf32>
    %12 = arith.mulf %10, %11 : vector<32x128xf32>
    %13 = arith.addf %6, %12 : vector<32x128xf32>
    %14 = vector.extract_strided_slice %1 {offsets = [0, 1], sizes = [32, 1], strides = [1, 1]} : vector<32x4xf32> to vector<32x1xf32>
    %15 = vector.extract_strided_slice %7 {offsets = [1, 0], sizes = [1, 128], strides = [1, 1]} : vector<4x128xf32> to vector<1x128xf32>
    %16 = vector.broadcast %14 : vector<32x1xf32> to vector<32x128xf32>
    %17 = vector.broadcast %15 : vector<1x128xf32> to vector<32x128xf32>
    %18 = arith.mulf %16, %17 : vector<32x128xf32>
    %19 = arith.addf %13, %18 : vector<32x128xf32>
    %20 = vector.extract_strided_slice %1 {offsets = [0, 2], sizes = [32, 1], strides = [1, 1]} : vector<32x4xf32> to vector<32x1xf32>
    %21 = vector.extract_strided_slice %7 {offsets = [2, 0], sizes = [1, 128], strides = [1, 1]} : vector<4x128xf32> to vector<1x128xf32>
    %22 = vector.broadcast %20 : vector<32x1xf32> to vector<32x128xf32>
    %23 = vector.broadcast %21 : vector<1x128xf32> to vector<32x128xf32>
    %24 = arith.mulf %22, %23 : vector<32x128xf32>
    %25 = arith.addf %19, %24 : vector<32x128xf32>
    %26 = vector.extract_strided_slice %1 {offsets = [0, 3], sizes = [32, 1], strides = [1, 1]} : vector<32x4xf32> to vector<32x1xf32>
    %27 = vector.extract_strided_slice %7 {offsets = [3, 0], sizes = [1, 128], strides = [1, 1]} : vector<4x128xf32> to vector<1x128xf32>
    %28 = vector.broadcast %26 : vector<32x1xf32> to vector<32x128xf32>
    %29 = vector.broadcast %27 : vector<1x128xf32> to vector<32x128xf32>
    %30 = arith.mulf %28, %29 : vector<32x128xf32>
    %31 = arith.addf %25, %30 : vector<32x128xf32>
    %cst = arith.constant 0.000000e+00 : f32
    %32 = vector.broadcast %cst : f32 to vector<32x128xf32>
    %33 = arith.maximumf %31, %32 : vector<32x128xf32>
    %34 = vector.broadcast %3 : vector<32x1xf32> to vector<32x128xf32>
    %35 = arith.mulf %33, %34 : vector<32x128xf32>
    %cst_5 = arith.constant dense<0.000000e+00> : vector<128xf32>
    %36 = vector.multi_reduction <add>, %35, %cst_5 [0] : vector<32x128xf32> to vector<128xf32>
    %37 = vector.shape_cast %36 : vector<128xf32> to vector<1x128xf32>
    %38 = vector.broadcast %4 : f32 to vector<1x128xf32>
    %39 = arith.addf %37, %38 : vector<1x128xf32>
    %c0_6 = arith.constant 0 : index
    %c0_7 = arith.constant 0 : index
    %40 = vector.load %arg4[%c0_6, %c0_7] : memref<1x128xf32, #tpu.memory_space<vmem>>, vector<1x128xf32>
    tpu.vector_store %arg4[%c0_6, %c0_7], %39 {strides = array<i32>} : memref<1x128xf32, #tpu.memory_space<vmem>>, vector<1x128xf32>,
    return
  }
  func.func @transform_0(%arg0: i32) -> (i32, i32) {
    %c0_i32 = arith.constant 0 : i32
    %c0_i32_0 = arith.constant 0 : i32
    return %c0_i32, %arg0 : i32, i32
  }
  func.func @transform_1(%arg0: i32) -> (i32, i32) {
    %c0_i32 = arith.constant 0 : i32
    %c0_i32_0 = arith.constant 0 : i32
    %c0_i32_1 = arith.constant 0 : i32
    return %c0_i32, %c0_i32_0 : i32, i32
  }
  func.func @transform_2(%arg0: i32) -> (i32, i32) {
    %c0_i32 = arith.constant 0 : i32
    %c0_i32_0 = arith.constant 0 : i32
    %c0_i32_1 = arith.constant 0 : i32
    return %c0_i32, %c0_i32_0 : i32, i32
  }
  func.func @transform_3(%arg0: i32) -> (i32, i32) {
    %c0_i32 = arith.constant 0 : i32
    %c0_i32_0 = arith.constant 0 : i32
    return %c0_i32, %arg0 : i32, i32
  }
}

</mosaic_0001>

<llo_original>
// kernel: tpu_custom_call.1
$region0: #{tpu_custom_call.1}
  #allocation0 [shape = 'u32[]', space=smem, size = 0x4, offset = 0x4, fixed_abs, tag = 'smem constant byte address 0x4 - core index']
  #allocation1 [shape = 'u32[72,128]{1,0:T(1,128)}', space=vmem, size = 0x9000, scoped, tag = 'internal scratch']
  #allocation2 [shape = 'f32[1,1]{1,0:T(1,128)S(6)}', space=smem, size = 0x200, scoped, tag = 'scoped memory for tpu_custom_call.1']
  %s0 = inlined_call_operand.vmem [shape: f32[4,128], index: 0, kind: input, shape index: {}]
  %s1 = inlined_call_operand.vmem [shape: f32[32,6], index: 1, kind: input, shape index: {}]
  %s2 = inlined_call_operand.<no memory space> [shape: f32[1,1], index: 2, kind: input, shape index: {}]
  %s3 = inlined_call_operand.hbm [shape: f32[1,128], index: 3, kind: output, shape index: {}]
  %s4 = sld [smem:[#allocation0]]
  $region22: #{tpu_custom_call.1} parent=0
    _
  %s6 = ssub.s32 1, %s4
  %s7 = scalar_select 0, %s6, %s4
  %8 = sst [smem:[#allocation2]] %s2
  $region1: #{tpu_custom_call.1} parent=0
    #allocation3 [shape = 'u8[512]{0}', space=vmem, size = 0x400, scoped, tag = 'output window, operand 0, single buffered']
    #allocation4 [shape = 's32[1]{0}', space=sflag, size = 0x4, scoped, tag = 'scoped memory for tpu_custom_call.1']
    %9 = vsyncpa [#allocation4], 0
    // Predicated region
    $region2: #{tpu_custom_call.1} parent=1 // pred_check
      _
    $region3: #{tpu_custom_call.1} parent=1 // pred_check_branch
      %11 = sbr.rel (0) target = $region5
    $region4: #{tpu_custom_call.1} parent=1 // pred_region
      _
    $region5: #{tpu_custom_call.1} parent=1 // pred_fallthru
      _
    // Predicated region
    $region6: #{tpu_custom_call.1} parent=1 // pred_check
      _
    $region7: #{tpu_custom_call.1} parent=1 // pred_check_branch
      %13 = sbr.rel (0) target = $region9
    $region8: #{tpu_custom_call.1} parent=1 // pred_region
      _
    $region9: #{tpu_custom_call.1} parent=1 // pred_fallthru
      _
    // Predicated region
    $region10: #{tpu_custom_call.1} parent=1 // pred_check
      _
    $region11: #{tpu_custom_call.1} parent=1 // pred_check_branch
      %15 = sbr.rel (0) target = $region13
    $region12: #{tpu_custom_call.1} parent=1 // pred_region
      _
    $region13: #{tpu_custom_call.1} parent=1 // pred_fallthru
      _
    %v16 = vld [vmem:[%s1] sm:$0xff]
    %v17 = vld [vmem:[%s1 + $0x8] sm:$0xff]
    %v18 = vld [vmem:[%s1 + $0x10] sm:$0xff]
    %v19 = vld [vmem:[%s1 + $0x18] sm:$0xff]
    %s20 = sld [smem:[#allocation2]]
    %22 = vset.pattern.permute.xlu0 4
    %23 = vperm.xlu0 %22, %v16
    %v24 = vpop.permute.xlu0 %23
    %27 = vset.pattern.permute.xlu0 4
    %28 = vperm.xlu0 %27, %v17
    %v29 = vpop.permute.xlu0 %28
    %32 = vset.pattern.permute.xlu0 4
    %33 = vperm.xlu0 %32, %v18
    %v34 = vpop.permute.xlu0 %33
    %37 = vset.pattern.permute.xlu0 4
    %38 = vperm.xlu0 %37, %v19
    %v39 = vpop.permute.xlu0 %38
    %v41 = vld [vmem:[%s0] sm:$0xf]
    %42 = vset.pattern.permute.xlu0 0
    %43 = vperm.xlu0 %42, %v16
    %v44 = vpop.permute.xlu0 %43
    %46 = vset.pattern.permute.xlu0 0
    %47 = vperm.xlu0 %46, %v17
    %v48 = vpop.permute.xlu0 %47
    %50 = vset.pattern.permute.xlu0 0
    %51 = vperm.xlu0 %50, %v18
    %v52 = vpop.permute.xlu0 %51
    %54 = vset.pattern.permute.xlu0 0
    %55 = vperm.xlu0 %54, %v19
    %v56 = vpop.permute.xlu0 %55
    %v58 = vperm.slane %v41, 0
    %v59 = vmul.f32 %v44, %v58
    %v60 = vmul.f32 %v48, %v58
    %v61 = vmul.f32 %v52, %v58
    %v62 = vmul.f32 %v56, %v58
    %v63 = vadd.f32 %v24, %v59
    %v64 = vadd.f32 %v29, %v60
    %v65 = vadd.f32 %v34, %v61
    %v66 = vadd.f32 %v39, %v62
    %67 = vset.pattern.permute.xlu0 1
    %68 = vperm.xlu0 %67, %v16
    %v69 = vpop.permute.xlu0 %68
    %71 = vset.pattern.permute.xlu0 1
    %72 = vperm.xlu0 %71, %v17
    %v73 = vpop.permute.xlu0 %72
    %75 = vset.pattern.permute.xlu0 1
    %76 = vperm.xlu0 %75, %v18
    %v77 = vpop.permute.xlu0 %76
    %79 = vset.pattern.permute.xlu0 1
    %80 = vperm.xlu0 %79, %v19
    %v81 = vpop.permute.xlu0 %80
    %v83 = vperm.slane %v41, 1
    %v84 = vmul.f32 %v69, %v83
    %v85 = vmul.f32 %v73, %v83
    %v86 = vmul.f32 %v77, %v83
    %v87 = vmul.f32 %v81, %v83
    %v88 = vadd.f32 %v63, %v84
    %v89 = vadd.f32 %v64, %v85
    %v90 = vadd.f32 %v65, %v86
    %v91 = vadd.f32 %v66, %v87
    %92 = vset.pattern.permute.xlu0 2
    %93 = vperm.xlu0 %92, %v16
    %v94 = vpop.permute.xlu0 %93
    %96 = vset.pattern.permute.xlu0 2
    %97 = vperm.xlu0 %96, %v17
    %v98 = vpop.permute.xlu0 %97
    %100 = vset.pattern.permute.xlu0 2
    %101 = vperm.xlu0 %100, %v18
    %v102 = vpop.permute.xlu0 %101
    %104 = vset.pattern.permute.xlu0 2
    %105 = vperm.xlu0 %104, %v19
    %v106 = vpop.permute.xlu0 %105
    %v108 = vperm.slane %v41, 2
    %v109 = vmul.f32 %v94, %v108
    %v110 = vmul.f32 %v98, %v108
    %v111 = vmul.f32 %v102, %v108
    %v112 = vmul.f32 %v106, %v108
    %v113 = vadd.f32 %v88, %v109
    %v114 = vadd.f32 %v89, %v110
    %v115 = vadd.f32 %v90, %v111
    %v116 = vadd.f32 %v91, %v112
    %117 = vset.pattern.permute.xlu0 3
    %118 = vperm.xlu0 %117, %v16
    %v119 = vpop.permute.xlu0 %118
    %121 = vset.pattern.permute.xlu0 3
    %122 = vperm.xlu0 %121, %v17
    %v123 = vpop.permute.xlu0 %122
    %125 = vset.pattern.permute.xlu0 3
    %126 = vperm.xlu0 %125, %v18
    %v127 = vpop.permute.xlu0 %126
    %129 = vset.pattern.permute.xlu0 3
    %130 = vperm.xlu0 %129, %v19
    %v131 = vpop.permute.xlu0 %130
    %v133 = vperm.slane %v41, 3
    %v134 = vmul.f32 %v119, %v133
    %v135 = vmul.f32 %v123, %v133
    %v136 = vmul.f32 %v127, %v133
    %v137 = vmul.f32 %v131, %v133
    %v138 = vadd.f32 %v113, %v134
    %v139 = vadd.f32 %v114, %v135
    %v140 = vadd.f32 %v115, %v136
    %v141 = vadd.f32 %v116, %v137
    %v142 = vmax.f32 %v138, 0.0
    %v143 = vmax.f32 %v139, 0.0
    %v144 = vmax.f32 %v140, 0.0
    %v145 = vmax.f32 %v141, 0.0
    %146 = vset.pattern.permute.xlu0 5
    %147 = vperm.xlu0 %146, %v16
    %v148 = vpop.permute.xlu0 %147
    %150 = vset.pattern.permute.xlu0 5
    %151 = vperm.xlu0 %150, %v17
    %v152 = vpop.permute.xlu0 %151
    %154 = vset.pattern.permute.xlu0 5
    %155 = vperm.xlu0 %154, %v18
    %v156 = vpop.permute.xlu0 %155
    %158 = vset.pattern.permute.xlu0 5
    %159 = vperm.xlu0 %158, %v19
    %v160 = vpop.permute.xlu0 %159
    %v162 = vmul.f32 %v142, %v148
    %v163 = vmul.f32 %v143, %v152
    %v164 = vmul.f32 %v144, %v156
    %v165 = vmul.f32 %v145, %v160
    %v166 = vadd.f32 %v162, %v163
    %v167 = vadd.f32 %v166, %v164
    %v168 = vadd.f32 %v167, %v165
    %v169 = vrot.slane %v168, 4
    %v170 = vadd.f32 %v168, %v169
    %v171 = vrot.slane %v170, 2
    %v172 = vadd.f32 %v170, %v171
    %v173 = vrot.slane %v172, 1
    %v174 = vadd.f32 %v172, %v173
    %v175 = vstv %s20
    %v176 = vadd.f32 %v174, %v175
    %177 = vst [vmem:[#allocation3] sm:$0x1] %v176
    // Predicated region
    $region14: #{tpu_custom_call.1} parent=1 // pred_check
      _
    $region15: #{tpu_custom_call.1} parent=1 // pred_check_branch
      %179 = sbr.rel (0) target = $region17
    $region16: #{tpu_custom_call.1} parent=1 // pred_region
      %181 = vsyncadd [#allocation4], 0
      %s183 = sshll.u32 [#allocation3], 4
      %s184 = int_to_ptr.vmem [resolvable:$true] %s183
      %s185 = sshll.u32 %s3, 4
      %s186 = int_to_ptr.hbm [resolvable:$true] %s185
      %188 = dma.vmem_to_hbm [thread:$0]  %s184, 16, %s186, [#allocation4]
    $region17: #{tpu_custom_call.1} parent=1 // pred_fallthru
      _
    // Predicated region
    $region18: #{tpu_custom_call.1} parent=1 // pred_check
      _
    $region19: #{tpu_custom_call.1} parent=1 // pred_check_branch
      %190 = sbr.rel (0) target = $region21
    $region20: #{tpu_custom_call.1} parent=1 // pred_region
      %192 = dma.done [#allocation4], 16
    $region21: #{tpu_custom_call.1} parent=1 // pred_fallthru
      _
    %193 = vsyncpa [#allocation4], 1

</llo_original>
